<compile_context>
chip_gen: v6e
topology: v6e:2x2x1
jax: 0.10.0
libtpu: 0.0.40
codegen_flags: <defaults>
</compile_context>

<pallas_src>
import functools
from typing import NamedTuple

import jax
import jax.numpy as jnp
from jax.experimental import pallas as pl
from jax.experimental.pallas import tpu as pltpu


def _round_up(v, m):
    return (v + m - 1) // m * m


class LoRAParams(NamedTuple):
    wt: jax.Array      # (Kp, Np)  padded W.T              (compute dtype)
    at: jax.Array      # (Kp, Rp)  padded A.T              (compute dtype)
    bt: jax.Array      # (Rp, Np)  padded (alpha * B).T    (compute dtype)
    in_dim: int
    out_dim: int
    tile_k: int
    tile_n: int


def prepare_lora_weights(w, a, b, alpha, *, tile_n=512, tile_k=512,
                         compute_dtype=None):
    """One-time weight preparation: pad, transpose to NN layout, cast, and
    fold alpha into B.  Do this once per module, NOT per forward call."""
    out_dim, in_dim = w.shape
    rank = a.shape[0]
    cdt = jnp.dtype(compute_dtype) if compute_dtype is not None else jnp.dtype(w.dtype)

    # Lane-aligned (multiple of 128) tiles, clamped for small problems.
    tile_n = min(tile_n, _round_up(out_dim, 128))
    tile_k = min(tile_k, _round_up(in_dim, 128))
    Np = _round_up(out_dim, tile_n)
    Kp = _round_up(in_dim, tile_k)
    Rp = _round_up(rank, 128)          # lane-dense LoRA rank

    # Zero padding is numerically exact (padded K / rank contribute nothing).
    wt = jnp.pad(w.T.astype(cdt), ((0, Kp - in_dim), (0, Np - out_dim)))
    at = jnp.pad(a.T.astype(cdt), ((0, Kp - in_dim), (0, Rp - rank)))
    bt = jnp.pad((float(alpha) * b.T).astype(cdt),
                 ((0, Rp - rank), (0, Np - out_dim)))
    return LoRAParams(wt=wt, at=at, bt=bt, in_dim=in_dim, out_dim=out_dim,
                      tile_k=tile_k, tile_n=tile_n)


def _lora_kernel(x_ref, wt_ref, at_ref, bt_ref, o_ref,
                 acc_ref, aout_ref, aout_c_ref, *, tile_k):
    # x_ref:     (tm, tk)
    # wt_ref:    (tk, tn)   W.T tile        (NN dot, no transpose in-kernel)
    # at_ref:    (Kp, Rp)   full A.T        (VMEM resident, sliced per K step)
    # bt_ref:    (Rp, tn)   (alpha*B).T tile (constant over k -> no re-DMA)
    # o_ref:     (tm, tn)
    # acc_ref:   (tm, tn) f32  frozen-path accumulator
    # aout_ref:  (tm, Rp) f32  x @ A.T accumulator (filled at j==0, reused j>0)
    # aout_c_ref:(tm, Rp) cdt  cached cast of aout for the up-projection
    j = pl.program_id(1)
    k = pl.program_id(2)
    nk = pl.num_programs(2)

    @pl.when(k == 0)
    def _init_acc():
        acc_ref[...] = jnp.zeros_like(acc_ref)

    @pl.when((j == 0) & (k == 0))
    def _init_aout():
        aout_ref[...] = jnp.zeros_like(aout_ref)

    x = x_ref[...]

    # Frozen path: accumulate x @ W.T over the K tiles (natural NN form).
    acc_ref[...] += jnp.dot(x, wt_ref[...],
                            preferred_element_type=jnp.float32)

    # LoRA down-projection: only during the j == 0 sweep over K; A stays
    # resident in VMEM, slice out this step's K tile.
    @pl.when(j == 0)
    def _lora_down():
        start = pl.multiple_of(k * tile_k, tile_k)
        a_tile = at_ref[pl.ds(start, tile_k), :]
        aout_ref[...] += jnp.dot(x, a_tile,
                                 preferred_element_type=jnp.float32)

    # Cache the cast down-projection once per M tile (alpha is already folded
    # into B at prep time, so no per-epilogue scale).
    @pl.when((j == 0) & (k == nk - 1))
    def _cache_aout():
        aout_c_ref[...] = aout_ref[...].astype(aout_c_ref.dtype)

    # Epilogue at the last K step: rank up-projection + store.
    @pl.when(k == nk - 1)
    def _epilogue():
        lora = jnp.dot(aout_c_ref[...], bt_ref[...],
                       preferred_element_type=jnp.float32)
        o_ref[...] = (acc_ref[...] + lora).astype(o_ref.dtype)


def lora_linear(x, params: LoRAParams, *, tile_m=512):
    """x: (..., in_dim); params from prepare_lora_weights()."""
    orig_shape = x.shape
    in_dim = orig_shape[-1]
    assert in_dim == params.in_dim, "x last dim must match prepared weights"

    cdt = params.wt.dtype
    cdt_size = jnp.dtype(cdt).itemsize
    out_dtype = x.dtype
    out_size = jnp.dtype(out_dtype).itemsize

    x2d = x.reshape(-1, in_dim).astype(cdt)
    M = x2d.shape[0]

    Kp, Np = params.wt.shape
    Rp = params.at.shape[1]
    tile_k, tile_n = params.tile_k, params.tile_n

    # Sublane alignment for the M (second-to-last) dim: 8 for f32, 16 for bf16.
    sub = max(8, 32 // cdt_size)
    tile_m = min(tile_m, _round_up(M, sub))
    Mp = _round_up(M, tile_m)

    if (Mp, Kp) != (M, in_dim):
        x2d = jnp.pad(x2d, ((0, Mp - M), (0, Kp - in_dim)))

    grid = (Mp // tile_m, Np // tile_n, Kp // tile_k)
    ni, nj, nk = grid

    kernel = functools.partial(_lora_kernel, tile_k=tile_k)

    # Real streamed traffic: x re-read per N tile, W re-read per M tile,
    # A fetched once (resident), B once per (i, j), output written once.
    cost = pl.CostEstimate(
        flops=2 * Mp * Np * Kp + 2 * Mp * Rp * Kp + 2 * Mp * Np * Rp,
        transcendentals=0,
        bytes_accessed=(Mp * Kp * nj + Kp * Np * ni + Kp * Rp
                        + Rp * Np * ni) * cdt_size + Mp * Np * out_size,
    )

    # VMEM footprint estimate (double-buffered streamed blocks + resident A
    # + f32 / cast scratch).  Raise the scoped limit so large tiles are not
    # blocked by the default ceiling (esp. v5e's 16 MiB default).
    vmem_bytes = (
        2 * (tile_m * tile_k + tile_k * tile_n + Rp * tile_n) * cdt_size
        + 2 * Kp * Rp * cdt_size
        + 2 * tile_m * tile_n * out_size
        + (tile_m * tile_n + tile_m * Rp) * 4
        + tile_m * Rp * cdt_size)
    vmem_limit = int(min(max(vmem_bytes * 3 // 2, 32 * 1024 * 1024),
                         64 * 1024 * 1024))

    out = pl.pallas_call(
        kernel,
        out_shape=jax.ShapeDtypeStruct((Mp, Np), out_dtype),
        grid_spec=pltpu.PrefetchScalarGridSpec(
            num_scalar_prefetch=0,
            grid=grid,
            in_specs=[
                # x: streamed per (i, k); re-read for every N tile.
                pl.BlockSpec((tile_m, tile_k), lambda i, j, k: (i, k)),
                # W.T: streamed per (k, j).
                pl.BlockSpec((tile_k, tile_n), lambda i, j, k: (k, j)),
                # A.T: full array, constant block index -> fetched once,
                # VMEM resident for the whole kernel.
                pl.BlockSpec((Kp, Rp), lambda i, j, k: (0, 0)),
                # (alpha*B).T: index depends only on j -> no re-DMA over K.
                pl.BlockSpec((Rp, tile_n), lambda i, j, k: (0, j)),
            ],
            out_specs=pl.BlockSpec((tile_m, tile_n), lambda i, j, k: (i, j)),
            scratch_shapes=[
                pltpu.VMEM((tile_m, tile_n), jnp.float32),  # frozen acc
                pltpu.VMEM((tile_m, Rp), jnp.float32),      # x @ A.T acc
                pltpu.VMEM((tile_m, Rp), cdt),              # cached cast a_out
            ],
        ),
        # N must stay "arbitrary": the a_out scratch computed during the j==0
        # sweep is reused by all j>0 tiles of the same M tile.
        compiler_params=pltpu.CompilerParams(
            dimension_semantics=("parallel", "arbitrary", "arbitrary"),
            vmem_limit_bytes=vmem_limit),
        cost_estimate=cost,
    )(x2d, params.wt, params.at, params.bt)

    return out[:M, :params.out_dim].reshape(
        orig_shape[:-1] + (params.out_dim,))


if __name__ == "__main__":
    # Small shapes consistent with the module's forward.
    batch, seq = 2, 8
    in_dim, out_dim, rank = 32, 64, 4
    alpha = 2.0

    key = jax.random.PRNGKey(0)
    kx, kw, ka, kb = jax.random.split(key, 4)

    x = jax.random.normal(kx, (batch, seq, in_dim), dtype=jnp.float32)
    # Parameter shapes follow nn.Linear: (out, in).
    w = jax.random.normal(kw, (out_dim, in_dim), dtype=jnp.float32) * 0.05
    a = jax.random.normal(ka, (rank, in_dim), dtype=jnp.float32) * 0.05
    b = jax.random.normal(kb, (out_dim, rank), dtype=jnp.float32) * 0.05

    # One-time weight prep (pad / transpose / cast / fold alpha), then call.
    # For bf16 streaming on v6e/v7x pass compute_dtype=jnp.bfloat16 here.
    params = prepare_lora_weights(w, a, b, alpha)
    y = lora_linear(x, params)
    jax.block_until_ready(y)

    # Reference check in plain JAX (same math as the PyTorch forward).
    ref = x @ w.T + alpha * ((x @ a.T) @ b.T)
    assert y.shape == (batch, seq, out_dim)
    assert jnp.allclose(y, ref, atol=2e-3, rtol=2e-3), (
        float(jnp.max(jnp.abs(y - ref))))

    print("KERNEL_OK")
</pallas_src>

<mosaic_0001>
module attributes {stable_mosaic.version = 11 : i64} {
  func.func @_lora_kernel(%arg0: i32, %arg1: i32, %arg2: i32, %arg3: memref<16x128xf32, #tpu.memory_space<vmem>>, %arg4: memref<128x128xf32, #tpu.memory_space<vmem>>, %arg5: memref<128x128xf32, #tpu.memory_space<vmem>>, %arg6: memref<128x128xf32, #tpu.memory_space<vmem>>, %arg7: memref<16x128xf32, #tpu.memory_space<vmem>>, %arg8: memref<16x128xf32, #tpu.memory_space<vmem>>, %arg9: memref<16x128xf32, #tpu.memory_space<vmem>>, %arg10: memref<16x128xf32, #tpu.memory_space<vmem>>) attributes {dimension_semantics = [#tpu.dimension_semantics<parallel>, #tpu.dimension_semantics<arbitrary>, #tpu.dimension_semantics<arbitrary>], iteration_bounds = array<i64: 1, 1, 1>, scalar_prefetch = 0 : i64, scratch_operands = 3 : i64, tpu.core_type = #tpu.core_type<tc>, window_params = [{transform_indices = @transform_0, window_bounds = array<i64: 16, 128>}, {transform_indices = @transform_1, window_bounds = array<i64: 128, 128>}, {pipeline_mode = #tpu.pipeline_mode<synchronous>, transform_indices = @transform_2, window_bounds = array<i64: 128, 128>}, {transform_indices = @transform_3, window_bounds = array<i64: 128, 128>}, {transform_indices = @transform_4, window_bounds = array<i64: 16, 128>}]} {
    %c0_i32 = arith.constant 0 : i32
    %0 = arith.cmpi eq, %arg2, %c0_i32 : i32
    %1 = arith.extui %0 : i1 to i32
    %c0_i32_0 = arith.constant 0 : i32
    %2 = arith.cmpi ne, %1, %c0_i32_0 : i32
    scf.if %2 {
      %cst_18 = arith.constant 0.000000e+00 : f32
      %25 = vector.broadcast %cst_18 : f32 to vector<16x128xf32>
      %c0_19 = arith.constant 0 : index
      %c0_20 = arith.constant 0 : index
      %26 = vector.load %arg8[%c0_19, %c0_20] : memref<16x128xf32, #tpu.memory_space<vmem>>, vector<16x128xf32>
      tpu.vector_store %arg8[%c0_19, %c0_20], %25 {strides = array<i32>} : memref<16x128xf32, #tpu.memory_space<vmem>>, vector<16x128xf32>,
    } else {
    }
    %c0_i32_1 = arith.constant 0 : i32
    %3 = arith.cmpi eq, %arg1, %c0_i32_1 : i32
    %c0_i32_2 = arith.constant 0 : i32
    %4 = arith.cmpi eq, %arg2, %c0_i32_2 : i32
    %5 = arith.andi %3, %4 : i1
    %6 = arith.extui %5 : i1 to i32
    %c0_i32_3 = arith.constant 0 : i32
    %7 = arith.cmpi ne, %6, %c0_i32_3 : i32
    scf.if %7 {
      %cst_18 = arith.constant 0.000000e+00 : f32
      %25 = vector.broadcast %cst_18 : f32 to vector<16x128xf32>
      %c0_19 = arith.constant 0 : index
      %c0_20 = arith.constant 0 : index
      %26 = vector.load %arg9[%c0_19, %c0_20] : memref<16x128xf32, #tpu.memory_space<vmem>>, vector<16x128xf32>
      tpu.vector_store %arg9[%c0_19, %c0_20], %25 {strides = array<i32>} : memref<16x128xf32, #tpu.memory_space<vmem>>, vector<16x128xf32>,
    } else {
    }
    %c0 = arith.constant 0 : index
    %c0_4 = arith.constant 0 : index
    %8 = vector.load %arg3[%c0, %c0_4] : memref<16x128xf32, #tpu.memory_space<vmem>>, vector<16x128xf32>
    %c0_5 = arith.constant 0 : index
    %c0_6 = arith.constant 0 : index
    %9 = vector.load %arg8[%c0_5, %c0_6] : memref<16x128xf32, #tpu.memory_space<vmem>>, vector<16x128xf32>
    %c0_7 = arith.constant 0 : index
    %c0_8 = arith.constant 0 : index
    %10 = vector.load %arg4[%c0_7, %c0_8] : memref<128x128xf32, #tpu.memory_space<vmem>>, vector<128x128xf32>
    %cst = arith.constant dense<0.000000e+00> : vector<16x128xf32>
    %11 = tpu.matmul %8, %10, %cst {dimension_numbers = #tpu.dot_dimension_numbers<[1], [0], [0], [1], [0, 0, 1, 1], [], []>} : vector<16x128xf32>, vector<128x128xf32>, vector<16x128xf32> -> vector<16x128xf32>
    %12 = arith.addf %9, %11 : vector<16x128xf32>
    %c0_9 = arith.constant 0 : index
    %c0_10 = arith.constant 0 : index
    %13 = vector.load %arg8[%c0_9, %c0_10] : memref<16x128xf32, #tpu.memory_space<vmem>>, vector<16x128xf32>
    tpu.vector_store %arg8[%c0_9, %c0_10], %12 {strides = array<i32>} : memref<16x128xf32, #tpu.memory_space<vmem>>, vector<16x128xf32>,
    %c0_i32_11 = arith.constant 0 : i32
    %14 = arith.cmpi eq, %arg1, %c0_i32_11 : i32
    %15 = arith.extui %14 : i1 to i32
    %c0_i32_12 = arith.constant 0 : i32
    %16 = arith.cmpi ne, %15, %c0_i32_12 : i32
    scf.if %16 {
      %c128_i32 = arith.constant 128 : i32
      %25 = arith.muli %arg2, %c128_i32 : i32
      %26 = tpu.assume_multiple %25, 128 : i32
      %27 = arith.index_cast %26 : i32 to index
      %c0_18 = arith.constant 0 : index
      %28 = vector.load %arg5[%27, %c0_18] : memref<128x128xf32, #tpu.memory_space<vmem>>, vector<128x128xf32>
      %c0_19 = arith.constant 0 : index
      %c0_20 = arith.constant 0 : index
      %29 = vector.load %arg9[%c0_19, %c0_20] : memref<16x128xf32, #tpu.memory_space<vmem>>, vector<16x128xf32>
      %cst_21 = arith.constant dense<0.000000e+00> : vector<16x128xf32>
      %30 = tpu.matmul %8, %28, %cst_21 {dimension_numbers = #tpu.dot_dimension_numbers<[1], [0], [0], [1], [0, 0, 1, 1], [], []>} : vector<16x128xf32>, vector<128x128xf32>, vector<16x128xf32> -> vector<16x128xf32>
      %31 = arith.addf %29, %30 : vector<16x128xf32>
      %c0_22 = arith.constant 0 : index
      %c0_23 = arith.constant 0 : index
      %32 = vector.load %arg9[%c0_22, %c0_23] : memref<16x128xf32, #tpu.memory_space<vmem>>, vector<16x128xf32>
      tpu.vector_store %arg9[%c0_22, %c0_23], %31 {strides = array<i32>} : memref<16x128xf32, #tpu.memory_space<vmem>>, vector<16x128xf32>,
    } else {
    }
    %c0_i32_13 = arith.constant 0 : i32
    %17 = arith.cmpi eq, %arg1, %c0_i32_13 : i32
    %c0_i32_14 = arith.constant 0 : i32
    %18 = arith.cmpi eq, %arg2, %c0_i32_14 : i32
    %19 = arith.andi %17, %18 : i1
    %20 = arith.extui %19 : i1 to i32
    %c0_i32_15 = arith.constant 0 : i32
    %21 = arith.cmpi ne, %20, %c0_i32_15 : i32
    scf.if %21 {
      %c0_18 = arith.constant 0 : index
      %c0_19 = arith.constant 0 : index
      %25 = vector.load %arg9[%c0_18, %c0_19] : memref<16x128xf32, #tpu.memory_space<vmem>>, vector<16x128xf32>
      %c0_20 = arith.constant 0 : index
      %c0_21 = arith.constant 0 : index
      %26 = vector.load %arg10[%c0_20, %c0_21] : memref<16x128xf32, #tpu.memory_space<vmem>>, vector<16x128xf32>
      tpu.vector_store %arg10[%c0_20, %c0_21], %25 {strides = array<i32>} : memref<16x128xf32, #tpu.memory_space<vmem>>, vector<16x128xf32>,
    } else {
    }
    %c0_i32_16 = arith.constant 0 : i32
    %22 = arith.cmpi eq, %arg2, %c0_i32_16 : i32
    %23 = arith.extui %22 : i1 to i32
    %c0_i32_17 = arith.constant 0 : i32
    %24 = arith.cmpi ne, %23, %c0_i32_17 : i32
    scf.if %24 {
      %c0_18 = arith.constant 0 : index
      %c0_19 = arith.constant 0 : index
      %25 = vector.load %arg10[%c0_18, %c0_19] : memref<16x128xf32, #tpu.memory_space<vmem>>, vector<16x128xf32>
      %c0_20 = arith.constant 0 : index
      %c0_21 = arith.constant 0 : index
      %26 = vector.load %arg6[%c0_20, %c0_21] : memref<128x128xf32, #tpu.memory_space<vmem>>, vector<128x128xf32>
      %cst_22 = arith.constant dense<0.000000e+00> : vector<16x128xf32>
      %27 = tpu.matmul %25, %26, %cst_22 {dimension_numbers = #tpu.dot_dimension_numbers<[1], [0], [0], [1], [0, 0, 1, 1], [], []>} : vector<16x128xf32>, vector<128x128xf32>, vector<16x128xf32> -> vector<16x128xf32>
      %c0_23 = arith.constant 0 : index
      %c0_24 = arith.constant 0 : index
      %28 = vector.load %arg8[%c0_23, %c0_24] : memref<16x128xf32, #tpu.memory_space<vmem>>, vector<16x128xf32>
      %29 = arith.addf %28, %27 : vector<16x128xf32>
      %c0_25 = arith.constant 0 : index
      %c0_26 = arith.constant 0 : index
      %30 = vector.load %arg7[%c0_25, %c0_26] : memref<16x128xf32, #tpu.memory_space<vmem>>, vector<16x128xf32>
      tpu.vector_store %arg7[%c0_25, %c0_26], %29 {strides = array<i32>} : memref<16x128xf32, #tpu.memory_space<vmem>>, vector<16x128xf32>,
    } else {
    }
    return
  }
  func.func @transform_0(%arg0: i32, %arg1: i32, %arg2: i32) -> (i32, i32) {
    %c0_i32 = arith.constant 0 : i32
    return %arg0, %arg2 : i32, i32
  }
  func.func @transform_1(%arg0: i32, %arg1: i32, %arg2: i32) -> (i32, i32) {
    %c0_i32 = arith.constant 0 : i32
    return %arg2, %arg1 : i32, i32
  }
  func.func @transform_2(%arg0: i32, %arg1: i32, %arg2: i32) -> (i32, i32) {
    %c0_i32 = arith.constant 0 : i32
    %c0_i32_0 = arith.constant 0 : i32
    %c0_i32_1 = arith.constant 0 : i32
    return %c0_i32, %c0_i32_0 : i32, i32
  }
  func.func @transform_3(%arg0: i32, %arg1: i32, %arg2: i32) -> (i32, i32) {
    %c0_i32 = arith.constant 0 : i32
    %c0_i32_0 = arith.constant 0 : i32
    return %c0_i32, %arg1 : i32, i32
  }
  func.func @transform_4(%arg0: i32, %arg1: i32, %arg2: i32) -> (i32, i32) {
    %c0_i32 = arith.constant 0 : i32
    return %arg0, %arg1 : i32, i32
  }
}

</mosaic_0001>

<llo_original>
// kernel: tpu_custom_call.1
$region0: #{tpu_custom_call.1}
  #allocation0 [shape = 'u32[]', space=smem, size = 0x4, offset = 0x4, fixed_abs, tag = 'smem constant byte address 0x4 - core index']
  #allocation1 [shape = 'u32[144,128]{1,0:T(1,128)}', space=vmem, size = 0x12000, scoped, tag = 'internal scratch']
  #allocation2 [shape = 'f32[16,128]{1,0:T(8,128)}', space=vmem, size = 0x2000, scoped, tag = 'scratch operand']
  #allocation3 [shape = 'f32[16,128]{1,0:T(8,128)}', space=vmem, size = 0x2000, scoped, tag = 'scratch operand']
  #allocation4 [shape = 'f32[16,128]{1,0:T(8,128)}', space=vmem, size = 0x2000, scoped, tag = 'scratch operand']
  %s0 = inlined_call_operand.hbm [shape: f32[16,128], index: 0, kind: input, shape index: {}]
  %s1 = inlined_call_operand.hbm [shape: f32[128,128], index: 1, kind: input, shape index: {}]
  %s2 = inlined_call_operand.hbm [shape: f32[128,128], index: 2, kind: input, shape index: {}]
  %s3 = inlined_call_operand.hbm [shape: f32[128,128], index: 3, kind: input, shape index: {}]
  %s4 = inlined_call_operand.hbm [shape: f32[16,128], index: 4, kind: output, shape index: {}]
  %s5 = sld [smem:[#allocation0]]
  $region62: #{tpu_custom_call.1} parent=0
    _
  %s7 = ssub.s32 1, %s5
  %s8 = scalar_select 0, %s7, %s5
  $region1: #{tpu_custom_call.1} parent=0
    #allocation5 [shape = 'u8[8192]{0}', space=vmem, size = 0x2000, scoped, tag = 'input window, operand 0, single buffered']
    #allocation6 [shape = 's32[1]{0}', space=sflag, size = 0x4, scoped, tag = 'scoped memory for tpu_custom_call.1']
    #allocation7 [shape = 's32[1]{0}', space=sflag, size = 0x4, scoped, tag = 'scoped memory for tpu_custom_call.1']
    #allocation8 [shape = 'u8[65536]{0}', space=vmem, size = 0x10000, scoped, tag = 'input window, operand 1, single buffered']
    #allocation9 [shape = 's32[1]{0}', space=sflag, size = 0x4, scoped, tag = 'scoped memory for tpu_custom_call.1']
    #allocation10 [shape = 'u8[65536]{0}', space=vmem, size = 0x10000, scoped, tag = 'input window, operand 2, single buffered']
    #allocation11 [shape = 'u8[65536]{0}', space=vmem, size = 0x10000, scoped, tag = 'input window, operand 3, single buffered']
    #allocation12 [shape = 's32[1]{0}', space=sflag, size = 0x4, scoped, tag = 'scoped memory for tpu_custom_call.1']
    #allocation13 [shape = 'u8[8192]{0}', space=vmem, size = 0x2000, scoped, tag = 'output window, operand 0, single buffered']
    %9 = vsyncpa [#allocation6], 0
    %10 = vsyncpa [#allocation9], 0
    %11 = vsyncpa [#allocation12], 0
    %12 = vsyncpa [#allocation7], 0
    // Predicated region
    $region2: #{tpu_custom_call.1} parent=1 // pred_check
      _
    $region3: #{tpu_custom_call.1} parent=1 // pred_check_branch
      %14 = sbr.rel (0) target = $region5
    $region4: #{tpu_custom_call.1} parent=1 // pred_region
      %s16 = ssub.s32 256, 256
      %17 = vsyncadd [#allocation6], %s16
      %s18 = sshll.u32 [#allocation5], 4
      %s19 = int_to_ptr.vmem [resolvable:$true] %s18
      %24 = dma.hbm_to_vmem [thread:$0]  %s0, 256, %s19, [#allocation6], 128, 128, 8
    $region5: #{tpu_custom_call.1} parent=1 // pred_fallthru
      _
    // Predicated region
    $region6: #{tpu_custom_call.1} parent=1 // pred_check
      _
    $region7: #{tpu_custom_call.1} parent=1 // pred_check_branch
      %26 = sbr.rel (0) target = $region9
    $region8: #{tpu_custom_call.1} parent=1 // pred_region
      %s28 = ssub.s32 2048, 2048
      %29 = vsyncadd [#allocation9], %s28
      %s30 = sshll.u32 [#allocation8], 4
      %s31 = int_to_ptr.vmem [resolvable:$true] %s30
      %36 = dma.hbm_to_vmem [thread:$0]  %s1, 2048, %s31, [#allocation9], 128, 128, 8
    $region9: #{tpu_custom_call.1} parent=1 // pred_fallthru
      _
    // Predicated region
    $region10: #{tpu_custom_call.1} parent=1 // pred_check
      _
    $region11: #{tpu_custom_call.1} parent=1 // pred_check_branch
      %38 = sbr.rel (0) target = $region13
    $region12: #{tpu_custom_call.1} parent=1 // pred_region
      %s40 = ssub.s32 2048, 2048
      %41 = vsyncadd [#allocation9], %s40
      %s42 = sshll.u32 [#allocation10], 4
      %s43 = int_to_ptr.vmem [resolvable:$true] %s42
      %48 = dma.hbm_to_vmem [thread:$0]  %s2, 2048, %s43, [#allocation9], 128, 128, 8
    $region13: #{tpu_custom_call.1} parent=1 // pred_fallthru
      _
    // Predicated region
    $region14: #{tpu_custom_call.1} parent=1 // pred_check
      _
    $region15: #{tpu_custom_call.1} parent=1 // pred_check_branch
      %50 = sbr.rel (0) target = $region17
    $region16: #{tpu_custom_call.1} parent=1 // pred_region
      %s52 = ssub.s32 2048, 2048
      %53 = vsyncadd [#allocation12], %s52
      %s54 = sshll.u32 [#allocation11], 4
      %s55 = int_to_ptr.vmem [resolvable:$true] %s54
      %60 = dma.hbm_to_vmem [thread:$0]  %s3, 2048, %s55, [#allocation12], 128, 128, 8
    $region17: #{tpu_custom_call.1} parent=1 // pred_fallthru
      _
    // Predicated region
    $region18: #{tpu_custom_call.1} parent=1 // pred_check
      _
    $region19: #{tpu_custom_call.1} parent=1 // pred_check_branch
      %62 = sbr.rel (0) target = $region21
    $region20: #{tpu_custom_call.1} parent=1 // pred_region
      %63 = dma.done [#allocation6], 256
    $region21: #{tpu_custom_call.1} parent=1 // pred_fallthru
      _
    // Predicated region
    $region22: #{tpu_custom_call.1} parent=1 // pred_check
      _
    $region23: #{tpu_custom_call.1} parent=1 // pred_check_branch
      %65 = sbr.rel (0) target = $region25
    $region24: #{tpu_custom_call.1} parent=1 // pred_region
      %66 = dma.done [#allocation9], 2048
    $region25: #{tpu_custom_call.1} parent=1 // pred_fallthru
      _
    // Predicated region
    $region26: #{tpu_custom_call.1} parent=1 // pred_check
      _
    $region27: #{tpu_custom_call.1} parent=1 // pred_check_branch
      %68 = sbr.rel (0) target = $region29
    $region28: #{tpu_custom_call.1} parent=1 // pred_region
      %69 = dma.done [#allocation9], 2048
    $region29: #{tpu_custom_call.1} parent=1 // pred_fallthru
      _
    // Predicated region
    $region30: #{tpu_custom_call.1} parent=1 // pred_check
      _
    $region31: #{tpu_custom_call.1} parent=1 // pred_check_branch
      %71 = sbr.rel (0) target = $region33
    $region32: #{tpu_custom_call.1} parent=1 // pred_region
      %72 = dma.done [#allocation12], 2048
    $region33: #{tpu_custom_call.1} parent=1 // pred_fallthru
      _
    %p73 = scmp.eq.s32.totalorder 0, 0
    // Predicated region
    $region34: #{tpu_custom_call.1} parent=1 // pred_check
      %p74 = pneg %p73
    $region35: #{tpu_custom_call.1} parent=1 // pred_check_branch
      %76 = sbr.rel (%p74) target = $region37
    $region36: #{tpu_custom_call.1} parent=1 // pred_region
      %77 = vst [vmem:[#allocation2] sm:$0xff] 0.0
      %78 = vst [vmem:[#allocation2 + $0x8] sm:$0xff] 0.0
    $region37: #{tpu_custom_call.1} parent=1 // pred_fallthru
      _
    %p79 = scmp.eq.s32.totalorder 0, 0
    %p80 = pnand %p79, %p73
    %p81 = pneg %p80
    // Predicated region
    $region38: #{tpu_custom_call.1} parent=1 // pred_check
      _
    $region39: #{tpu_custom_call.1} parent=1 // pred_check_branch
      %83 = sbr.rel (%p80) target = $region41
    $region40: #{tpu_custom_call.1} parent=1 // pred_region
      %84 = vst [vmem:[#allocation3] sm:$0xff] 0.0
      %85 = vst [vmem:[#allocation3 + $0x8] sm:$0xff] 0.0
    $region41: #{tpu_custom_call.1} parent=1 // pred_fallthru
      _
    %v86 = vld [vmem:[#allocation5] sm:$0xff]
    %v87 = vld [vmem:[#allocation5 + $0x8] sm:$0xff]
    %v88 = vld [vmem:[#allocation2] sm:$0xff]
    %v89 = vld [vmem:[#allocation2 + $0x8] sm:$0xff]
    %v90 = vld [vmem:[#allocation8] sm:$0xff]
    %v91 = vld [vmem:[#allocation8 + $0x8] sm:$0xff]
    %v92 = vld [vmem:[#allocation8 + $0x10] sm:$0xff]
    %v93 = vld [vmem:[#allocation8 + $0x18] sm:$0xff]
    %v94 = vld [vmem:[#allocation8 + $0x20] sm:$0xff]
    %v95 = vld [vmem:[#allocation8 + $0x28] sm:$0xff]
    %v96 = vld [vmem:[#allocation8 + $0x30] sm:$0xff]
    %v97 = vld [vmem:[#allocation8 + $0x38] sm:$0xff]
    %v98 = vld [vmem:[#allocation8 + $0x40] sm:$0xff]
    %v99 = vld [vmem:[#allocation8 + $0x48] sm:$0xff]
    %v100 = vld [vmem:[#allocation8 + $0x50] sm:$0xff]
    %v101 = vld [vmem:[#allocation8 + $0x58] sm:$0xff]
    %v102 = vld [vmem:[#allocation8 + $0x60] sm:$0xff]
    %v103 = vld [vmem:[#allocation8 + $0x68] sm:$0xff]
    %v104 = vld [vmem:[#allocation8 + $0x70] sm:$0xff]
    %v105 = vld [vmem:[#allocation8 + $0x78] sm:$0xff]
    %106 = vmatprep.subr.mxu0 0.0
    %107 = vmatpush1.msra.mxu0 %v105
    %108 = vmatprep.subr.mxu0 0.0
    %109 = vmatpush1.msra.mxu0 %v104
    %110 = vmatprep.subr.mxu0 0.0
    %111 = vmatpush1.msra.mxu0 %v103
    %112 = vmatprep.subr.mxu0 0.0
    %113 = vmatpush1.msra.mxu0 %v102
    %114 = vmatprep.subr.mxu0 0.0
    %115 = vmatpush1.msra.mxu0 %v101
    %116 = vmatprep.subr.mxu0 0.0
    %117 = vmatpush1.msra.mxu0 %v100
    %118 = vmatprep.subr.mxu0 0.0
    %119 = vmatpush1.msra.mxu0 %v99
    %120 = vmatprep.subr.mxu0 0.0
    %121 = vmatpush1.msra.mxu0 %v98
    %122 = vmatprep.subr.mxu0 0.0
    %123 = vmatpush1.msra.mxu0 %v97
    %124 = vmatprep.subr.mxu0 0.0
    %125 = vmatpush1.msra.mxu0 %v96
    %126 = vmatprep.subr.mxu0 0.0
    %127 = vmatpush1.msra.mxu0 %v95
    %128 = vmatprep.subr.mxu0 0.0
    %129 = vmatpush1.msra.mxu0 %v94
    %130 = vmatprep.subr.mxu0 0.0
    %131 = vmatpush1.msra.mxu0 %v93
    %132 = vmatprep.subr.mxu0 0.0
    %133 = vmatpush1.msra.mxu0 %v92
    %134 = vmatprep.subr.mxu0 0.0
    %135 = vmatpush1.msra.mxu0 %v91
    %136 = vmatprep.subr.mxu0 0.0
    %137 = vmatpush1.msra.mxu0 %v90
    %138 = vmatprep.subr.mxu0 0.0
    %139 = vmatpush2.msra.mxu0 0.0
    %140 = vmatprep.subr.mxu0 0.0
    %141 = vmatpush2.msra.mxu0 0.0
    %142 = vmatprep.subr.mxu0 0.0
    %143 = vmatpush2.msra.mxu0 0.0
    %144 = vmatprep.subr.mxu0 0.0
    %145 = vmatpush2.msra.mxu0 0.0
    %146 = vmatprep.subr.mxu0 0.0
    %147 = vmatpush2.msra.mxu0 0.0
    %148 = vmatprep.subr.mxu0 0.0
    %149 = vmatpush2.msra.mxu0 0.0
    %150 = vmatprep.subr.mxu0 0.0
    %151 = vmatpush2.msra.mxu0 0.0
    %152 = vmatprep.subr.mxu0 0.0
    %153 = vmatpush2.msra.mxu0 0.0
    %154 = vmatprep.subr.mxu0 0.0
    %155 = vmatpush2.msra.mxu0 0.0
    %156 = vmatprep.subr.mxu0 0.0
    %157 = vmatpush2.msra.mxu0 0.0
    %158 = vmatprep.subr.mxu0 0.0
    %159 = vmatpush2.msra.mxu0 0.0
    %160 = vmatprep.subr.mxu0 0.0
    %161 = vmatpush2.msra.mxu0 0.0
    %162 = vmatprep.subr.mxu0 0.0
    %163 = vmatpush2.msra.mxu0 0.0
    %164 = vmatprep.subr.mxu0 0.0
    %165 = vmatpush2.msra.mxu0 0.0
    %166 = vmatprep.subr.mxu0 0.0
    %167 = vmatpush2.msra.mxu0 0.0
    %168 = vmatprep.subr.mxu0 0.0
    %169 = vmatpush2.msra.mxu0 0.0
    %170 = vmatprep.mubr.f32.mxu0 0.0
    %171 = vmatmul.mubr.f32.gmra.mxu0 %v86
    %v172 = vpop.f32.mrf.mxu0
    %v173 = vadd.f32 0.0, %v172
    %v174 = vpop.f32.mrf.mxu0
    %175 = vmatprep.mubr.f32.mxu0 0.0
    %176 = vmatmul.mubr.f32.gmra.mxu0 %v87
    %v177 = vpop.f32.mrf.mxu0
    %v178 = vadd.f32 0.0, %v177
    %v179 = vpop.f32.mrf.mxu0
    %180 = vdwg.mxu0
    %v181 = vadd.f32 %v88, %v173
    %v182 = vadd.f32 %v89, %v178
    %183 = vst [vmem:[#allocation2] sm:$0xff] %v181
    %184 = vst [vmem:[#allocation2 + $0x8] sm:$0xff] %v182
    // Predicated region
    $region42: #{tpu_custom_call.1} parent=1 // pred_check
      %p185 = pneg %p79
    $region43: #{tpu_custom_call.1} parent=1 // pred_check_branch
      %187 = sbr.rel (%p185) target = $region45
    $region44: #{tpu_custom_call.1} parent=1 // pred_region
      %s188 = smul.u32 0, 128
      %s189 = scalar_lea.vmem [#allocation10], %s188
      %v190 = vld [vmem:[%s189] sm:$0xff]
      %v191 = vld [vmem:[%s189 + $0x8] sm:$0xff]
      %v192 = vld [vmem:[%s189 + $0x10] sm:$0xff]
      %v193 = vld [vmem:[%s189 + $0x18] sm:$0xff]
      %v194 = vld [vmem:[%s189 + $0x20] sm:$0xff]
      %v195 = vld [vmem:[%s189 + $0x28] sm:$0xff]
      %v196 = vld [vmem:[%s189 + $0x30] sm:$0xff]
      %v197 = vld [vmem:[%s189 + $0x38] sm:$0xff]
      %v198 = vld [vmem:[%s189 + $0x40] sm:$0xff]
      %v199 = vld [vmem:[%s189 + $0x48] sm:$0xff]
      %v200 = vld [vmem:[%s189 + $0x50] sm:$0xff]
      %v201 = vld [vmem:[%s189 + $0x58] sm:$0xff]
      %v202 = vld [vmem:[%s189 + $0x60] sm:$0xff]
      %v203 = vld [vmem:[%s189 + $0x68] sm:$0xff]
      %v204 = vld [vmem:[%s189 + $0x70] sm:$0xff]
      %v205 = vld [vmem:[%s189 + $0x78] sm:$0xff]
      %v206 = vld [vmem:[#allocation3] sm:$0xff]
      %v207 = vld [vmem:[#allocation3 + $0x8] sm:$0xff]
      %208 = vmatprep.subr.mxu0 0.0
      %209 = vmatpush1.msra.mxu0 %v205
      %210 = vmatprep.subr.mxu0 0.0
      %211 = vmatpush1.msra.mxu0 %v204
      %212 = vmatprep.subr.mxu0 0.0
      %213 = vmatpush1.msra.mxu0 %v203
      %214 = vmatprep.subr.mxu0 0.0
      %215 = vmatpush1.msra.mxu0 %v202
      %216 = vmatprep.subr.mxu0 0.0
      %217 = vmatpush1.msra.mxu0 %v201
      %218 = vmatprep.subr.mxu0 0.0
      %219 = vmatpush1.msra.mxu0 %v200
      %220 = vmatprep.subr.mxu0 0.0
      %221 = vmatpush1.msra.mxu0 %v199
      %222 = vmatprep.subr.mxu0 0.0
      %223 = vmatpush1.msra.mxu0 %v198
      %224 = vmatprep.subr.mxu0 0.0
      %225 = vmatpush1.msra.mxu0 %v197
      %226 = vmatprep.subr.mxu0 0.0
      %227 = vmatpush1.msra.mxu0 %v196
      %228 = vmatprep.subr.mxu0 0.0
      %229 = vmatpush1.msra.mxu0 %v195
      %230 = vmatprep.subr.mxu0 0.0
      %231 = vmatpush1.msra.mxu0 %v194
      %232 = vmatprep.subr.mxu0 0.0
      %233 = vmatpush1.msra.mxu0 %v193
      %234 = vmatprep.subr.mxu0 0.0
      %235 = vmatpush1.msra.mxu0 %v192
      %236 = vmatprep.subr.mxu0 0.0
      %237 = vmatpush1.msra.mxu0 %v191
      %238 = vmatprep.subr.mxu0 0.0
      %239 = vmatpush1.msra.mxu0 %v190
      %240 = vmatprep.subr.mxu0 0.0
      %241 = vmatpush2.msra.mxu0 0.0
      %242 = vmatprep.subr.mxu0 0.0
      %243 = vmatpush2.msra.mxu0 0.0
      %244 = vmatprep.subr.mxu0 0.0
      %245 = vmatpush2.msra.mxu0 0.0
      %246 = vmatprep.subr.mxu0 0.0
      %247 = vmatpush2.msra.mxu0 0.0
      %248 = vmatprep.subr.mxu0 0.0
      %249 = vmatpush2.msra.mxu0 0.0
      %250 = vmatprep.subr.mxu0 0.0
      %251 = vmatpush2.msra.mxu0 0.0
      %252 = vmatprep.subr.mxu0 0.0
      %253 = vmatpush2.msra.mxu0 0.0
      %254 = vmatprep.subr.mxu0 0.0
      %255 = vmatpush2.msra.mxu0 0.0
      %256 = vmatprep.subr.mxu0 0.0
      %257 = vmatpush2.msra.mxu0 0.0
      %258 = vmatprep.subr.mxu0 0.0
      %259 = vmatpush2.msra.mxu0 0.0
      %260 = vmatprep.subr.mxu0 0.0
      %261 = vmatpush2.msra.mxu0 0.0
      %262 = vmatprep.subr.mxu0 0.0
      %263 = vmatpush2.msra.mxu0 0.0
      %264 = vmatprep.subr.mxu0 0.0
      %265 = vmatpush2.msra.mxu0 0.0
      %266 = vmatprep.subr.mxu0 0.0
      %267 = vmatpush2.msra.mxu0 0.0
      %268 = vmatprep.subr.mxu0 0.0
      %269 = vmatpush2.msra.mxu0 0.0
      %270 = vmatprep.subr.mxu0 0.0
      %271 = vmatpush2.msra.mxu0 0.0
      %272 = vmatprep.mubr.f32.mxu0 0.0
      %273 = vmatmul.mubr.f32.gmra.mxu0 %v86
      %v274 = vpop.f32.mrf.mxu0
      %v275 = vadd.f32 0.0, %v274
      %v276 = vpop.f32.mrf.mxu0
      %277 = vmatprep.mubr.f32.mxu0 0.0
      %278 = vmatmul.mubr.f32.gmra.mxu0 %v87
      %v279 = vpop.f32.mrf.mxu0
      %v280 = vadd.f32 0.0, %v279
      %v281 = vpop.f32.mrf.mxu0
      %282 = vdwg.mxu0
      %v283 = vadd.f32 %v206, %v275
      %v284 = vadd.f32 %v207, %v280
      %285 = vst [vmem:[#allocation3] sm:$0xff] %v283
      %286 = vst [vmem:[#allocation3 + $0x8] sm:$0xff] %v284
    $region45: #{tpu_custom_call.1} parent=1 // pred_fallthru
      _
    // Predicated region
    $region46: #{tpu_custom_call.1} parent=1 // pred_check
      _
    $region47: #{tpu_custom_call.1} parent=1 // pred_check_branch
      %288 = sbr.rel (%p80) target = $region49
    $region48: #{tpu_custom_call.1} parent=1 // pred_region
      %v289 = vld [vmem:[#allocation3] sm:$0xff]
      %v290 = vld [vmem:[#allocation3 + $0x8] sm:$0xff]
      %291 = vst [vmem:[#allocation4] sm:$0xff] %v289
      %292 = vst [vmem:[#allocation4 + $0x8] sm:$0xff] %v290
    $region49: #{tpu_custom_call.1} parent=1 // pred_fallthru
      _
    // Predicated region
    $region50: #{tpu_custom_call.1} parent=1 // pred_check
      %p293 = pneg %p73
    $region51: #{tpu_custom_call.1} parent=1 // pred_check_branch
      %295 = sbr.rel (%p293) target = $region53
    $region52: #{tpu_custom_call.1} parent=1 // pred_region
      %v296 = vld [vmem:[#allocation4] sm:$0xff]
      %v297 = vld [vmem:[#allocation4 + $0x8] sm:$0xff]
      %v298 = vld [vmem:[#allocation11] sm:$0xff]
      %v299 = vld [vmem:[#allocation11 + $0x8] sm:$0xff]
      %v300 = vld [vmem:[#allocation11 + $0x10] sm:$0xff]
      %v301 = vld [vmem:[#allocation11 + $0x18] sm:$0xff]
      %v302 = vld [vmem:[#allocation11 + $0x20] sm:$0xff]
      %v303 = vld [vmem:[#allocation11 + $0x28] sm:$0xff]
      %v304 = vld [vmem:[#allocation11 + $0x30] sm:$0xff]
      %v305 = vld [vmem:[#allocation11 + $0x38] sm:$0xff]
      %v306 = vld [vmem:[#allocation11 + $0x40] sm:$0xff]
      %v307 = vld [vmem:[#allocation11 + $0x48] sm:$0xff]
      %v308 = vld [vmem:[#allocation11 + $0x50] sm:$0xff]
      %v309 = vld [vmem:[#allocation11 + $0x58] sm:$0xff]
      %v310 = vld [vmem:[#allocation11 + $0x60] sm:$0xff]
      %v311 = vld [vmem:[#allocation11 + $0x68] sm:$0xff]
      %v312 = vld [vmem:[#allocation11 + $0x70] sm:$0xff]
      %v313 = vld [vmem:[#allocation11 + $0x78] sm:$0xff]
      %314 = vmatprep.subr.mxu0 0.0
      %315 = vmatpush1.msra.mxu0 %v313
      %316 = vmatprep.subr.mxu0 0.0
      %317 = vmatpush1.msra.mxu0 %v312
      %318 = vmatprep.subr.mxu0 0.0
      %319 = vmatpush1.msra.mxu0 %v311
      %320 = vmatprep.subr.mxu0 0.0
      %321 = vmatpush1.msra.mxu0 %v310
      %322 = vmatprep.subr.mxu0 0.0
      %323 = vmatpush1.msra.mxu0 %v309
      %324 = vmatprep.subr.mxu0 0.0
      %325 = vmatpush1.msra.mxu0 %v308
      %326 = vmatprep.subr.mxu0 0.0
      %327 = vmatpush1.msra.mxu0 %v307
      %328 = vmatprep.subr.mxu0 0.0
      %329 = vmatpush1.msra.mxu0 %v306
      %330 = vmatprep.subr.mxu0 0.0
      %331 = vmatpush1.msra.mxu0 %v305
      %332 = vmatprep.subr.mxu0 0.0
      %333 = vmatpush1.msra.mxu0 %v304
      %334 = vmatprep.subr.mxu0 0.0
      %335 = vmatpush1.msra.mxu0 %v303
      %336 = vmatprep.subr.mxu0 0.0
      %337 = vmatpush1.msra.mxu0 %v302
      %338 = vmatprep.subr.mxu0 0.0
      %339 = vmatpush1.msra.mxu0 %v301
      %340 = vmatprep.subr.mxu0 0.0
      %341 = vmatpush1.msra.mxu0 %v300
      %342 = vmatprep.subr.mxu0 0.0
      %343 = vmatpush1.msra.mxu0 %v299
      %344 = vmatprep.subr.mxu0 0.0
      %345 = vmatpush1.msra.mxu0 %v298
      %346 = vmatprep.subr.mxu0 0.0
      %347 = vmatpush2.msra.mxu0 0.0
      %348 = vmatprep.subr.mxu0 0.0
      %349 = vmatpush2.msra.mxu0 0.0
      %350 = vmatprep.subr.mxu0 0.0
      %351 = vmatpush2.msra.mxu0 0.0
      %352 = vmatprep.subr.mxu0 0.0
      %353 = vmatpush2.msra.mxu0 0.0
      %354 = vmatprep.subr.mxu0 0.0
      %355 = vmatpush2.msra.mxu0 0.0
      %356 = vmatprep.subr.mxu0 0.0
      %357 = vmatpush2.msra.mxu0 0.0
      %358 = vmatprep.subr.mxu0 0.0
      %359 = vmatpush2.msra.mxu0 0.0
      %360 = vmatprep.subr.mxu0 0.0
      %361 = vmatpush2.msra.mxu0 0.0
      %362 = vmatprep.subr.mxu0 0.0
      %363 = vmatpush2.msra.mxu0 0.0
      %364 = vmatprep.subr.mxu0 0.0
      %365 = vmatpush2.msra.mxu0 0.0
      %366 = vmatprep.subr.mxu0 0.0
      %367 = vmatpush2.msra.mxu0 0.0
      %368 = vmatprep.subr.mxu0 0.0
      %369 = vmatpush2.msra.mxu0 0.0
      %370 = vmatprep.subr.mxu0 0.0
      %371 = vmatpush2.msra.mxu0 0.0
      %372 = vmatprep.subr.mxu0 0.0
      %373 = vmatpush2.msra.mxu0 0.0
      %374 = vmatprep.subr.mxu0 0.0
      %375 = vmatpush2.msra.mxu0 0.0
      %376 = vmatprep.subr.mxu0 0.0
      %377 = vmatpush2.msra.mxu0 0.0
      %378 = vmatprep.mubr.f32.mxu0 0.0
      %379 = vmatmul.mubr.f32.gmra.mxu0 %v296
      %v380 = vpop.f32.mrf.mxu0
      %v381 = vadd.f32 0.0, %v380
      %v382 = vpop.f32.mrf.mxu0
      %383 = vmatprep.mubr.f32.mxu0 0.0
      %384 = vmatmul.mubr.f32.gmra.mxu0 %v297
      %v385 = vpop.f32.mrf.mxu0
      %v386 = vadd.f32 0.0, %v385
      %v387 = vpop.f32.mrf.mxu0
      %388 = vdwg.mxu0
      %v389 = vld [vmem:[#allocation2] sm:$0xff]
      %v390 = vld [vmem:[#allocation2 + $0x8] sm:$0xff]
      %v391 = vadd.f32 %v389, %v381
      %v392 = vadd.f32 %v390, %v386
      %393 = vst [vmem:[#allocation13] sm:$0xff] %v391
      %394 = vst [vmem:[#allocation13 + $0x8] sm:$0xff] %v392
    $region53: #{tpu_custom_call.1} parent=1 // pred_fallthru
      _
    // Predicated region
    $region54: #{tpu_custom_call.1} parent=1 // pred_check
      _
    $region55: #{tpu_custom_call.1} parent=1 // pred_check_branch
      %396 = sbr.rel (0) target = $region57
    $region56: #{tpu_custom_call.1} parent=1 // pred_region
      %s398 = ssub.s32 256, 256
      %399 = vsyncadd [#allocation7], %s398
      %s400 = sshll.u32 [#allocation13], 4
      %s401 = int_to_ptr.vmem [resolvable:$true] %s400
      %406 = dma.vmem_to_hbm [thread:$0]  %s401, 256, %s4, [#allocation7], 128, 128, 8
    $region57: #{tpu_custom_call.1} parent=1 // pred_fallthru
      _
    // Predicated region
    $region58: #{tpu_custom_call.1} parent=1 // pred_check
      _
    $region59: #{tpu_custom_call.1} parent=1 // pred_check_branch
      %408 = sbr.rel (0) target = $region61
    $region60: #{tpu_custom_call.1} parent=1 // pred_region
      %409 = dma.done [#allocation7], 256
    $region61: #{tpu_custom_call.1} parent=1 // pred_fallthru
      _
    %410 = vsyncpa [#allocation6], 1
    %411 = vsyncpa [#allocation9], 1
    %412 = vsyncpa [#allocation12], 1
    %413 = vsyncpa [#allocation7], 1

</llo_original>
